<compile_context>
chip_gen: v7x
topology: tpu7x:2x2x1
jax: 0.10.0
libtpu: 0.0.40
codegen_flags: <defaults>
</compile_context>

<pallas_src>
import functools

import jax
import jax.numpy as jnp
from jax.experimental import pallas as pl
from jax.experimental.pallas import tpu as pltpu

LANE = 128       # lane width: weight/output last dims padded here (unmasked vst)
SUBLANE = 16     # bf16 sublane packing: token-tile row granularity
TILE_M_CAP = 1024
MIN_GRID = 4     # >= 2 grid steps per TensorCore on v7x whenever M allows


def _round_up(x, m):
    return (x + m - 1) // m * m


def _cdiv(a, b):
    return -(-a // b)


# ----------------------------- Pallas kernel --------------------------------

def world_model_kernel(patches_ref, w_enc_ref, b_enc_ref,
                       w1_ref, b1_ref, w2_ref, b2_ref, out_ref):
    """Fused forward: patch-embed conv (as matmul) + GELU, then MLP dynamics.

    patches_ref : [tile_m, K]   bf16  (one token tile, streamed per grid step)
    w_*_ref     : bf16 weights (lane dims padded to 128), b_*_ref : f32 biases
    out_ref     : [tile_m, D_p] bf16
    """
    x = patches_ref[...]                                           # bf16
    # --- encoder: conv-as-matmul on the MXU (bf16 in, f32 accumulate) ---
    enc = jnp.dot(x, w_enc_ref[...], preferred_element_type=jnp.float32)
    # TODO(synk): PyTorch nn.GELU default is exact erf-GELU; tanh-approx GELU
    # is used here (guaranteed Mosaic lowering). Switch if exact numerics
    # are required.
    enc = jax.nn.gelu(enc + b_enc_ref[...])                        # f32 VPU/EUP
    # --- dynamics MLP: Linear -> GELU -> Linear, encoding stays on-chip ---
    h = jnp.dot(enc.astype(jnp.bfloat16), w1_ref[...],
                preferred_element_type=jnp.float32)
    h = jax.nn.gelu(h + b1_ref[...])
    y = jnp.dot(h.astype(jnp.bfloat16), w2_ref[...],
                preferred_element_type=jnp.float32)
    out_ref[...] = (y + b2_ref[...]).astype(out_ref.dtype)         # bf16 writeback


# ------------------------------ JAX wrapper ----------------------------------

def patchify_nchw(x, patch):
    """NCHW -> [B*Np, C*P*P] im2col for a stride=kernel=P conv."""
    B, C, H, W = x.shape
    P = patch
    x = x.reshape(B, C, H // P, P, W // P, P)
    x = jnp.transpose(x, (0, 2, 4, 1, 3, 5))      # [B, H/P, W/P, C, P, P]
    return x.reshape(B * (H // P) * (W // P), C * P * P)
    # TODO(synk): for large inputs fold this im2col into the tile DMA
    # (BlockSpec index_map over (batch, patch-row) on the raw input) so the
    # activations make a single HBM pass instead of transpose + kernel read.


def _pad2(a, rows, cols, dtype):
    """Zero-pad a 2-D array to (rows, cols) and cast (padding is inert)."""
    return jnp.pad(a, ((0, rows - a.shape[0]), (0, cols - a.shape[1]))).astype(dtype)


@functools.partial(jax.jit, static_argnames=("patch",))
def world_model_forward(x, params, patch):
    """x: [B, C, H, W] (NCHW, like PyTorch). Returns prediction [B, Np, D]."""
    B, C, H, W = x.shape
    Np = (H // patch) * (W // patch)
    K = C * patch * patch
    D = params["w_enc"].shape[1]
    Hd = params["w1"].shape[1]

    # Pad ONLY the lane/output dims (D, H) to 128.  The streamed contraction
    # dim K stays unpadded -> halves the dominant HBM input stream.
    D_p, H_p = _round_up(D, LANE), _round_up(Hd, LANE)

    # im2col as one fused transpose+cast pass (no K padding).
    patches = patchify_nchw(x, patch).astype(jnp.bfloat16)        # [M, K] bf16
    M = patches.shape[0]

    # Token tiling: choose #tiles first (>= MIN_GRID so both v7x TCs get work),
    # then tile size, so M_p never balloons for awkward M.
    n_tiles = max(MIN_GRID, _cdiv(M, TILE_M_CAP))
    tile_m = max(SUBLANE, _round_up(_cdiv(M, n_tiles), SUBLANE))
    M_p = _round_up(M, tile_m)
    grid_m = M_p // tile_m

    patches_p = patches if M_p == M else jnp.pad(patches, ((0, M_p - M), (0, 0)))

    # pad + cast weights (zero padding is inert: padded enc/h columns are
    # gelu(0) == 0, padded weight rows are zero)
    w_enc = _pad2(params["w_enc"], K, D_p, jnp.bfloat16)
    w1 = _pad2(params["w1"], D_p, H_p, jnp.bfloat16)
    w2 = _pad2(params["w2"], H_p, D_p, jnp.bfloat16)
    b_enc = _pad2(params["b_enc"], 1, D_p, jnp.float32)
    b1 = _pad2(params["b1"], 1, H_p, jnp.float32)
    b2 = _pad2(params["b2"], 1, D_p, jnp.float32)

    # VMEM budget: double-buffered bf16 in/out tiles + resident weights + f32
    # intermediates, 2x headroom; capped below v7x's 64 MiB physical VMEM.
    tile_bytes = 2 * tile_m * K * 2 + 2 * tile_m * D_p * 2
    weight_bytes = (K * D_p + D_p * H_p + H_p * D_p) * 2 + (2 * D_p + H_p) * 4
    act_bytes = tile_m * (D_p + H_p + D_p) * 4
    vmem_bytes = int(min(48 << 20,
                         max(16 << 20, 2 * (tile_bytes + weight_bytes + act_bytes))))

    token_map = lambda i: (i, 0)
    resident = lambda i: (0, 0)

    out = pl.pallas_call(
        world_model_kernel,
        out_shape=jax.ShapeDtypeStruct((M_p, D_p), jnp.bfloat16),
        grid_spec=pl.GridSpec(
            grid=(grid_m,),
            in_specs=[
                pl.BlockSpec((tile_m, K), token_map),   # patches (streamed, K unpadded)
                pl.BlockSpec((K, D_p), resident),       # w_enc   (VMEM-resident)
                pl.BlockSpec((1, D_p), resident),       # b_enc
                pl.BlockSpec((D_p, H_p), resident),     # w1
                pl.BlockSpec((1, H_p), resident),       # b1
                pl.BlockSpec((H_p, D_p), resident),     # w2
                pl.BlockSpec((1, D_p), resident),       # b2
            ],
            out_specs=pl.BlockSpec((tile_m, D_p), token_map),
        ),
        compiler_params=pltpu.CompilerParams(
            dimension_semantics=("parallel",),            # 2 TCs on v7x
            vmem_limit_bytes=vmem_bytes,
        ),
    )(patches_p, w_enc, b_enc, w1, b1, w2, b2)

    # TODO(synk): hand the lane-dense padded [M_p, D_p] bf16 slab directly to
    # the downstream consumer when possible; slice kept only for the demo API.
    return out[:M, :D].astype(jnp.float32).reshape(B, Np, D)


def init_params(key, in_ch, patch, latent_dim, hidden_dim):
    k1, k2, k3 = jax.random.split(key, 3)
    K = in_ch * patch * patch
    return {
        "w_enc": jax.random.normal(k1, (K, latent_dim), jnp.float32) / jnp.sqrt(K),
        "b_enc": jnp.zeros((1, latent_dim), jnp.float32),
        "w1": jax.random.normal(k2, (latent_dim, hidden_dim), jnp.float32)
              / jnp.sqrt(latent_dim),
        "b1": jnp.zeros((1, hidden_dim), jnp.float32),
        "w2": jax.random.normal(k3, (hidden_dim, latent_dim), jnp.float32)
              / jnp.sqrt(hidden_dim),
        "b2": jnp.zeros((1, latent_dim), jnp.float32),
    }


# --------------------------------- main ---------------------------------------

if __name__ == "__main__":
    B, C, H, W = 2, 4, 16, 16       # NCHW input, as in PyTorch
    PATCH = 4                        # conv kernel = stride = 4
    LATENT = 32                      # encoder output dim
    HIDDEN = 64                      # dynamics MLP hidden dim

    key = jax.random.PRNGKey(0)
    kx, kp = jax.random.split(key)
    x = jax.random.normal(kx, (B, C, H, W), jnp.float32)
    params = init_params(kp, C, PATCH, LATENT, HIDDEN)

    pred = world_model_forward(x, params, PATCH)
    jax.block_until_ready(pred)

    # sanity check vs plain-JAX reference mimicking the kernel's bf16 numerics
    def bf(a):
        return a.astype(jnp.bfloat16).astype(jnp.float32)

    patches = patchify_nchw(x, PATCH)
    enc_ref = jax.nn.gelu(bf(patches) @ bf(params["w_enc"]) + params["b_enc"])
    h_ref = jax.nn.gelu(bf(enc_ref) @ bf(params["w1"]) + params["b1"])
    y_ref = bf(h_ref) @ bf(params["w2"]) + params["b2"]
    ref = bf(y_ref).reshape(B, -1, LATENT)          # kernel writes back bf16

    assert pred.shape == (B, (H // PATCH) * (W // PATCH), LATENT)
    assert jnp.allclose(pred, ref, atol=3e-2, rtol=3e-2)

    print("KERNEL_OK")
</pallas_src>

<mosaic_0001>
module attributes {stable_mosaic.version = 11 : i64} {
  func.func @world_model_kernel(%arg0: i32, %arg1: memref<16x64xbf16, #tpu.memory_space<vmem>>, %arg2: memref<64x128xbf16, #tpu.memory_space<vmem>>, %arg3: memref<1x128xf32, #tpu.memory_space<vmem>>, %arg4: memref<128x128xbf16, #tpu.memory_space<vmem>>, %arg5: memref<1x128xf32, #tpu.memory_space<vmem>>, %arg6: memref<128x128xbf16, #tpu.memory_space<vmem>>, %arg7: memref<1x128xf32, #tpu.memory_space<vmem>>, %arg8: memref<16x128xbf16, #tpu.memory_space<vmem>>) attributes {dimension_semantics = [#tpu.dimension_semantics<parallel>], iteration_bounds = array<i64: 2>, scalar_prefetch = 0 : i64, scratch_operands = 0 : i64, tpu.core_type = #tpu.core_type<tc>, window_params = [{transform_indices = @transform_0, window_bounds = array<i64: 16, 64>}, {pipeline_mode = #tpu.pipeline_mode<synchronous>, transform_indices = @transform_1, window_bounds = array<i64: 64, 128>}, {pipeline_mode = #tpu.pipeline_mode<synchronous>, transform_indices = @transform_2, window_bounds = array<i64: 1, 128>}, {pipeline_mode = #tpu.pipeline_mode<synchronous>, transform_indices = @transform_3, window_bounds = array<i64: 128, 128>}, {pipeline_mode = #tpu.pipeline_mode<synchronous>, transform_indices = @transform_4, window_bounds = array<i64: 1, 128>}, {pipeline_mode = #tpu.pipeline_mode<synchronous>, transform_indices = @transform_5, window_bounds = array<i64: 128, 128>}, {pipeline_mode = #tpu.pipeline_mode<synchronous>, transform_indices = @transform_6, window_bounds = array<i64: 1, 128>}, {transform_indices = @transform_7, window_bounds = array<i64: 16, 128>}]} {
    %c0 = arith.constant 0 : index
    %c0_0 = arith.constant 0 : index
    %0 = vector.load %arg1[%c0, %c0_0] : memref<16x64xbf16, #tpu.memory_space<vmem>>, vector<16x64xbf16>
    %c0_1 = arith.constant 0 : index
    %c0_2 = arith.constant 0 : index
    %1 = vector.load %arg2[%c0_1, %c0_2] : memref<64x128xbf16, #tpu.memory_space<vmem>>, vector<64x128xbf16>
    %cst = arith.constant dense<0.000000e+00> : vector<16x128xf32>
    %2 = tpu.matmul %0, %1, %cst {dimension_numbers = #tpu.dot_dimension_numbers<[1], [0], [0], [1], [0, 0, 1, 1], [], []>} : vector<16x64xbf16>, vector<64x128xbf16>, vector<16x128xf32> -> vector<16x128xf32>
    %c0_3 = arith.constant 0 : index
    %c0_4 = arith.constant 0 : index
    %3 = vector.load %arg3[%c0_3, %c0_4] : memref<1x128xf32, #tpu.memory_space<vmem>>, vector<1x128xf32>
    %4 = vector.broadcast %3 : vector<1x128xf32> to vector<16x128xf32>
    %5 = arith.addf %2, %4 : vector<16x128xf32>
    %6 = arith.mulf %5, %5 : vector<16x128xf32>
    %7 = arith.mulf %5, %6 : vector<16x128xf32>
    %cst_5 = arith.constant 4.471500e-02 : f32
    %8 = vector.broadcast %cst_5 : f32 to vector<16x128xf32>
    %9 = arith.mulf %8, %7 : vector<16x128xf32>
    %10 = arith.addf %5, %9 : vector<16x128xf32>
    %cst_6 = arith.constant 0.797884583 : f32
    %11 = vector.broadcast %cst_6 : f32 to vector<16x128xf32>
    %12 = arith.mulf %11, %10 : vector<16x128xf32>
    %13 = math.tanh %12 : vector<16x128xf32>
    %cst_7 = arith.constant 1.000000e+00 : f32
    %14 = vector.broadcast %cst_7 : f32 to vector<16x128xf32>
    %15 = arith.addf %14, %13 : vector<16x128xf32>
    %cst_8 = arith.constant 5.000000e-01 : f32
    %16 = vector.broadcast %cst_8 : f32 to vector<16x128xf32>
    %17 = arith.mulf %16, %15 : vector<16x128xf32>
    %18 = arith.mulf %5, %17 : vector<16x128xf32>
    %19 = arith.truncf %18 : vector<16x128xf32> to vector<16x128xbf16>
    %c0_9 = arith.constant 0 : index
    %c0_10 = arith.constant 0 : index
    %20 = vector.load %arg4[%c0_9, %c0_10] : memref<128x128xbf16, #tpu.memory_space<vmem>>, vector<128x128xbf16>
    %cst_11 = arith.constant dense<0.000000e+00> : vector<16x128xf32>
    %21 = tpu.matmul %19, %20, %cst_11 {dimension_numbers = #tpu.dot_dimension_numbers<[1], [0], [0], [1], [0, 0, 1, 1], [], []>} : vector<16x128xbf16>, vector<128x128xbf16>, vector<16x128xf32> -> vector<16x128xf32>
    %c0_12 = arith.constant 0 : index
    %c0_13 = arith.constant 0 : index
    %22 = vector.load %arg5[%c0_12, %c0_13] : memref<1x128xf32, #tpu.memory_space<vmem>>, vector<1x128xf32>
    %23 = vector.broadcast %22 : vector<1x128xf32> to vector<16x128xf32>
    %24 = arith.addf %21, %23 : vector<16x128xf32>
    %25 = arith.mulf %24, %24 : vector<16x128xf32>
    %26 = arith.mulf %24, %25 : vector<16x128xf32>
    %cst_14 = arith.constant 4.471500e-02 : f32
    %27 = vector.broadcast %cst_14 : f32 to vector<16x128xf32>
    %28 = arith.mulf %27, %26 : vector<16x128xf32>
    %29 = arith.addf %24, %28 : vector<16x128xf32>
    %cst_15 = arith.constant 0.797884583 : f32
    %30 = vector.broadcast %cst_15 : f32 to vector<16x128xf32>
    %31 = arith.mulf %30, %29 : vector<16x128xf32>
    %32 = math.tanh %31 : vector<16x128xf32>
    %cst_16 = arith.constant 1.000000e+00 : f32
    %33 = vector.broadcast %cst_16 : f32 to vector<16x128xf32>
    %34 = arith.addf %33, %32 : vector<16x128xf32>
    %cst_17 = arith.constant 5.000000e-01 : f32
    %35 = vector.broadcast %cst_17 : f32 to vector<16x128xf32>
    %36 = arith.mulf %35, %34 : vector<16x128xf32>
    %37 = arith.mulf %24, %36 : vector<16x128xf32>
    %38 = arith.truncf %37 : vector<16x128xf32> to vector<16x128xbf16>
    %c0_18 = arith.constant 0 : index
    %c0_19 = arith.constant 0 : index
    %39 = vector.load %arg6[%c0_18, %c0_19] : memref<128x128xbf16, #tpu.memory_space<vmem>>, vector<128x128xbf16>
    %cst_20 = arith.constant dense<0.000000e+00> : vector<16x128xf32>
    %40 = tpu.matmul %38, %39, %cst_20 {dimension_numbers = #tpu.dot_dimension_numbers<[1], [0], [0], [1], [0, 0, 1, 1], [], []>} : vector<16x128xbf16>, vector<128x128xbf16>, vector<16x128xf32> -> vector<16x128xf32>
    %c0_21 = arith.constant 0 : index
    %c0_22 = arith.constant 0 : index
    %41 = vector.load %arg7[%c0_21, %c0_22] : memref<1x128xf32, #tpu.memory_space<vmem>>, vector<1x128xf32>
    %42 = vector.broadcast %41 : vector<1x128xf32> to vector<16x128xf32>
    %43 = arith.addf %40, %42 : vector<16x128xf32>
    %44 = arith.truncf %43 : vector<16x128xf32> to vector<16x128xbf16>
    %c0_23 = arith.constant 0 : index
    %c0_24 = arith.constant 0 : index
    %45 = vector.load %arg8[%c0_23, %c0_24] : memref<16x128xbf16, #tpu.memory_space<vmem>>, vector<16x128xbf16>
    tpu.vector_store %arg8[%c0_23, %c0_24], %44 {strides = array<i32>} : memref<16x128xbf16, #tpu.memory_space<vmem>>, vector<16x128xbf16>,
    return
  }
  func.func @transform_0(%arg0: i32) -> (i32, i32) {
    %c0_i32 = arith.constant 0 : i32
    %c0_i32_0 = arith.constant 0 : i32
    return %arg0, %c0_i32 : i32, i32
  }
  func.func @transform_1(%arg0: i32) -> (i32, i32) {
    %c0_i32 = arith.constant 0 : i32
    %c0_i32_0 = arith.constant 0 : i32
    %c0_i32_1 = arith.constant 0 : i32
    return %c0_i32, %c0_i32_0 : i32, i32
  }
  func.func @transform_2(%arg0: i32) -> (i32, i32) {
    %c0_i32 = arith.constant 0 : i32
    %c0_i32_0 = arith.constant 0 : i32
    %c0_i32_1 = arith.constant 0 : i32
    return %c0_i32, %c0_i32_0 : i32, i32
  }
  func.func @transform_3(%arg0: i32) -> (i32, i32) {
    %c0_i32 = arith.constant 0 : i32
    %c0_i32_0 = arith.constant 0 : i32
    %c0_i32_1 = arith.constant 0 : i32
    return %c0_i32, %c0_i32_0 : i32, i32
  }
  func.func @transform_4(%arg0: i32) -> (i32, i32) {
    %c0_i32 = arith.constant 0 : i32
    %c0_i32_0 = arith.constant 0 : i32
    %c0_i32_1 = arith.constant 0 : i32
    return %c0_i32, %c0_i32_0 : i32, i32
  }
  func.func @transform_5(%arg0: i32) -> (i32, i32) {
    %c0_i32 = arith.constant 0 : i32
    %c0_i32_0 = arith.constant 0 : i32
    %c0_i32_1 = arith.constant 0 : i32
    return %c0_i32, %c0_i32_0 : i32, i32
  }
  func.func @transform_6(%arg0: i32) -> (i32, i32) {
    %c0_i32 = arith.constant 0 : i32
    %c0_i32_0 = arith.constant 0 : i32
    %c0_i32_1 = arith.constant 0 : i32
    return %c0_i32, %c0_i32_0 : i32, i32
  }
  func.func @transform_7(%arg0: i32) -> (i32, i32) {
    %c0_i32 = arith.constant 0 : i32
    %c0_i32_0 = arith.constant 0 : i32
    return %arg0, %c0_i32 : i32, i32
  }
}

</mosaic_0001>

<llo_original>
// kernel: world_model_forward.1
$region0: #{world_model_forward.1}
  #allocation0 [shape = 'u32[]', space=smem, size = 0x4, offset = 0x4, fixed_abs, tag = 'smem constant byte address 0x4 - core index']
  #allocation1 [shape = 'u32[144,128]{1,0:T(1,128)}', space=vmem, size = 0x12000, scoped, tag = 'internal scratch']
  %s0 = inlined_call_operand.vmem [shape: bf16[32,64], index: 0, kind: input, shape index: {}]
  %s1 = inlined_call_operand.vmem [shape: bf16[64,128], index: 1, kind: input, shape index: {}]
  %s2 = inlined_call_operand.vmem [shape: f32[1,128], index: 2, kind: input, shape index: {}]
  %s3 = inlined_call_operand.vmem [shape: bf16[128,128], index: 3, kind: input, shape index: {}]
  %s4 = inlined_call_operand.vmem [shape: f32[1,128], index: 4, kind: input, shape index: {}]
  %s5 = inlined_call_operand.vmem [shape: bf16[128,128], index: 5, kind: input, shape index: {}]
  %s6 = inlined_call_operand.vmem [shape: f32[1,128], index: 6, kind: input, shape index: {}]
  %s7 = inlined_call_operand.vmem [shape: bf16[32,128], index: 7, kind: output, shape index: {}]
  %s8 = sld [smem:[#allocation0]]
  $region61: #{world_model_forward.1} parent=0
    _
  %s10 = ssub.s32 1, %s8
  %s11 = scalar_select 0, %s10, %s8
  loop: start=0, step=1, limit=4
  $region2: #{world_model_forward.1} parent=0 // loop_pre_header
    _
  $region3: #{world_model_forward.1} parent=0 // loop_header
    %s13 = sphi 0, %s17
    %p14 = scmp.ge.s32.totalorder %s13, 4
    %s23 = sphi 0, %s25
    %s26 = sphi 0, %s23
    %s27 = sphi 0, %s26
    %s43 = sphi 0, %s27
    %s47 = sphi 0, %s47
    %s49 = sphi 0, %s47
    %s50 = sphi 0, %s49
    %s64 = sphi 0, %s50
    %s68 = sphi 0, %s68
    %s70 = sphi 0, %s68
    %s71 = sphi 0, %s70
    %s85 = sphi 0, %s71
    %s89 = sphi 0, %s89
    %s91 = sphi 0, %s89
    %s92 = sphi 0, %s91
    %s106 = sphi 0, %s92
    %s110 = sphi 0, %s110
    %s112 = sphi 0, %s110
    %s113 = sphi 0, %s112
    %s127 = sphi 0, %s113
    %s131 = sphi 0, %s131
    %s133 = sphi 0, %s131
    %s134 = sphi 0, %s133
    %s148 = sphi 0, %s134
    %s152 = sphi 0, %s152
    %s154 = sphi 0, %s152
    %s155 = sphi 0, %s154
    %s169 = sphi 0, %s155
    %s175 = sphi 0, %s177
    %s178 = sphi 0, %s175
    %s179 = sphi 0, %s178
    %s195 = sphi 0, %s179
  $region4: #{world_model_forward.1} parent=0 // loop_header_branch
    %16 = sbr.rel (%p14) target = $region8
  $region5: #{world_model_forward.1} parent=0 // loop_body
    %s18 = ssub.s32 %s13, 1
    %s19 = ssub.s32 %s13, 2
    %s20 = sadd.s32 %s13, 1
    %s21 = ssub.s32 %s13, %s20
    %p22 = scmp.eq.s32.totalorder %s21, 0
    %s24 = sadd.s32 %s23, 1
    %s25 = scalar_select %p22, %s23, %s24
    %p28 = pneg %p22
    %p29 = scmp.eq.s32.totalorder %s13, 1
    %p30 = por %p28, %p29
    %p31 = scmp.ne.s32.totalorder %s23, %s26
    %p32 = scmp.eq.s32.totalorder %s13, 0
    %p33 = por %p31, %p32
    %p34 = scmp.ne.s32.totalorder %s23, %s26
    %p35 = scmp.eq.s32.totalorder %s18, 1
    %p36 = por %p34, %p35
    %p37 = scmp.ne.s32.totalorder %s26, %s27
    %p38 = scmp.eq.s32.totalorder %s18, 0
    %p39 = por %p37, %p38
    %p40 = scmp.ne.s32.totalorder %s26, %s27
    %p41 = scmp.eq.s32.totalorder %s19, 1
    %p42 = por %p40, %p41
    %p44 = scmp.ne.s32.totalorder %s27, %s43
    %p45 = scmp.eq.s32.totalorder %s19, 0
    %p46 = por %p44, %p45
    %s48 = sadd.s32 %s47, 1
    %p51 = scmp.eq.s32.totalorder %s13, 1
    %p52 = scmp.ne.s32.totalorder %s47, %s49
    %p53 = scmp.eq.s32.totalorder %s13, 0
    %p54 = por %p52, %p53
    %p55 = scmp.ne.s32.totalorder %s47, %s49
    %p56 = scmp.eq.s32.totalorder %s18, 1
    %p57 = por %p55, %p56
    %p58 = scmp.ne.s32.totalorder %s49, %s50
    %p59 = scmp.eq.s32.totalorder %s18, 0
    %p60 = por %p58, %p59
    %p61 = scmp.ne.s32.totalorder %s49, %s50
    %p62 = scmp.eq.s32.totalorder %s19, 1
    %p63 = por %p61, %p62
    %p65 = scmp.ne.s32.totalorder %s50, %s64
    %p66 = scmp.eq.s32.totalorder %s19, 0
    %p67 = por %p65, %p66
    %s69 = sadd.s32 %s68, 1
    %p72 = scmp.eq.s32.totalorder %s13, 1
    %p73 = scmp.ne.s32.totalorder %s68, %s70
    %p74 = scmp.eq.s32.totalorder %s13, 0
    %p75 = por %p73, %p74
    %p76 = scmp.ne.s32.totalorder %s68, %s70
    %p77 = scmp.eq.s32.totalorder %s18, 1
    %p78 = por %p76, %p77
    %p79 = scmp.ne.s32.totalorder %s70, %s71
    %p80 = scmp.eq.s32.totalorder %s18, 0
    %p81 = por %p79, %p80
    %p82 = scmp.ne.s32.totalorder %s70, %s71
    %p83 = scmp.eq.s32.totalorder %s19, 1
    %p84 = por %p82, %p83
    %p86 = scmp.ne.s32.totalorder %s71, %s85
    %p87 = scmp.eq.s32.totalorder %s19, 0
    %p88 = por %p86, %p87
    %s90 = sadd.s32 %s89, 1
    %p93 = scmp.eq.s32.totalorder %s13, 1
    %p94 = scmp.ne.s32.totalorder %s89, %s91
    %p95 = scmp.eq.s32.totalorder %s13, 0
    %p96 = por %p94, %p95
    %p97 = scmp.ne.s32.totalorder %s89, %s91
    %p98 = scmp.eq.s32.totalorder %s18, 1
    %p99 = por %p97, %p98
    %p100 = scmp.ne.s32.totalorder %s91, %s92
    %p101 = scmp.eq.s32.totalorder %s18, 0
    %p102 = por %p100, %p101
    %p103 = scmp.ne.s32.totalorder %s91, %s92
    %p104 = scmp.eq.s32.totalorder %s19, 1
    %p105 = por %p103, %p104
    %p107 = scmp.ne.s32.totalorder %s92, %s106
    %p108 = scmp.eq.s32.totalorder %s19, 0
    %p109 = por %p107, %p108
    %s111 = sadd.s32 %s110, 1
    %p114 = scmp.eq.s32.totalorder %s13, 1
    %p115 = scmp.ne.s32.totalorder %s110, %s112
    %p116 = scmp.eq.s32.totalorder %s13, 0
    %p117 = por %p115, %p116
    %p118 = scmp.ne.s32.totalorder %s110, %s112
    %p119 = scmp.eq.s32.totalorder %s18, 1
    %p120 = por %p118, %p119
    %p121 = scmp.ne.s32.totalorder %s112, %s113
    %p122 = scmp.eq.s32.totalorder %s18, 0
    %p123 = por %p121, %p122
    %p124 = scmp.ne.s32.totalorder %s112, %s113
    %p125 = scmp.eq.s32.totalorder %s19, 1
    %p126 = por %p124, %p125
    %p128 = scmp.ne.s32.totalorder %s113, %s127
    %p129 = scmp.eq.s32.totalorder %s19, 0
    %p130 = por %p128, %p129
    %s132 = sadd.s32 %s131, 1
    %p135 = scmp.eq.s32.totalorder %s13, 1
    %p136 = scmp.ne.s32.totalorder %s131, %s133
    %p137 = scmp.eq.s32.totalorder %s13, 0
    %p138 = por %p136, %p137
    %p139 = scmp.ne.s32.totalorder %s131, %s133
    %p140 = scmp.eq.s32.totalorder %s18, 1
    %p141 = por %p139, %p140
    %p142 = scmp.ne.s32.totalorder %s133, %s134
    %p143 = scmp.eq.s32.totalorder %s18, 0
    %p144 = por %p142, %p143
    %p145 = scmp.ne.s32.totalorder %s133, %s134
    %p146 = scmp.eq.s32.totalorder %s19, 1
    %p147 = por %p145, %p146
    %p149 = scmp.ne.s32.totalorder %s134, %s148
    %p150 = scmp.eq.s32.totalorder %s19, 0
    %p151 = por %p149, %p150
    %s153 = sadd.s32 %s152, 1
    %p156 = scmp.eq.s32.totalorder %s13, 1
    %p157 = scmp.ne.s32.totalorder %s152, %s154
    %p158 = scmp.eq.s32.totalorder %s13, 0
    %p159 = por %p157, %p158
    %p160 = scmp.ne.s32.totalorder %s152, %s154
    %p161 = scmp.eq.s32.totalorder %s18, 1
    %p162 = por %p160, %p161
    %p163 = scmp.ne.s32.totalorder %s154, %s155
    %p164 = scmp.eq.s32.totalorder %s18, 0
    %p165 = por %p163, %p164
    %p166 = scmp.ne.s32.totalorder %s154, %s155
    %p167 = scmp.eq.s32.totalorder %s19, 1
    %p168 = por %p166, %p167
    %p170 = scmp.ne.s32.totalorder %s155, %s169
    %p171 = scmp.eq.s32.totalorder %s19, 0
    %p172 = por %p170, %p171
    %s173 = ssub.s32 %s13, %s20
    %p174 = scmp.eq.s32.totalorder %s173, 0
    %s176 = sadd.s32 %s175, 1
    %s177 = scalar_select %p174, %s175, %s176
    %p180 = pneg %p174
    %p181 = scmp.eq.s32.totalorder %s13, 1
    %p182 = por %p180, %p181
    %p183 = scmp.ne.s32.totalorder %s175, %s178
    %p184 = scmp.eq.s32.totalorder %s13, 0
    %p185 = por %p183, %p184
    %p186 = scmp.ne.s32.totalorder %s175, %s178
    %p187 = scmp.eq.s32.totalorder %s18, 1
    %p188 = por %p186, %p187
    %p189 = scmp.ne.s32.totalorder %s178, %s179
    %p190 = scmp.eq.s32.totalorder %s18, 0
    %p191 = por %p189, %p190
    %p192 = scmp.ne.s32.totalorder %s178, %s179
    %p193 = scmp.eq.s32.totalorder %s19, 1
    %p194 = por %p192, %p193
    %p196 = scmp.ne.s32.totalorder %s179, %s195
    %p197 = scmp.eq.s32.totalorder %s19, 0
    %p198 = por %p196, %p197
    %p199 = scmp.le.s32.totalorder 1, %s13
    %p200 = scmp.lt.s32.totalorder %s13, 3
    %p201 = pnand %p199, %p200
    %p202 = pneg %p201
    // Predicated region
    $region9: #{world_model_forward.1} parent=5 // pred_check
      _
    $region10: #{world_model_forward.1} parent=5 // pred_check_branch
      %204 = sbr.rel (%p201) target = $region12
    $region11: #{world_model_forward.1} parent=5 // pred_region
      %s205 = ssub.s32 %s13, 1
      // Predicated region
      $region13: #{world_model_forward.1} parent=11 // pred_check
        %p206 = pneg %p60
      $region14: #{world_model_forward.1} parent=11 // pred_check_branch
        %208 = sbr.rel (%p206) target = $region16
      $region15: #{world_model_forward.1} parent=11 // pred_region
        _
      $region16: #{world_model_forward.1} parent=11 // pred_fallthru
        _
      // Predicated region
      $region17: #{world_model_forward.1} parent=11 // pred_check
        %p209 = pneg %p81
      $region18: #{world_model_forward.1} parent=11 // pred_check_branch
        %211 = sbr.rel (%p209) target = $region20
      $region19: #{world_model_forward.1} parent=11 // pred_region
        _
      $region20: #{world_model_forward.1} parent=11 // pred_fallthru
        _
      // Predicated region
      $region21: #{world_model_forward.1} parent=11 // pred_check
        %p212 = pneg %p102
      $region22: #{world_model_forward.1} parent=11 // pred_check_branch
        %214 = sbr.rel (%p212) target = $region24
      $region23: #{world_model_forward.1} parent=11 // pred_region
        _
      $region24: #{world_model_forward.1} parent=11 // pred_fallthru
        _
      // Predicated region
      $region25: #{world_model_forward.1} parent=11 // pred_check
        %p215 = pneg %p123
      $region26: #{world_model_forward.1} parent=11 // pred_check_branch
        %217 = sbr.rel (%p215) target = $region28
      $region27: #{world_model_forward.1} parent=11 // pred_region
        _
      $region28: #{world_model_forward.1} parent=11 // pred_fallthru
        _
      // Predicated region
      $region29: #{world_model_forward.1} parent=11 // pred_check
        %p218 = pneg %p144
      $region30: #{world_model_forward.1} parent=11 // pred_check_branch
        %220 = sbr.rel (%p218) target = $region32
      $region31: #{world_model_forward.1} parent=11 // pred_region
        _
      $region32: #{world_model_forward.1} parent=11 // pred_fallthru
        _
      // Predicated region
      $region33: #{world_model_forward.1} parent=11 // pred_check
        %p221 = pneg %p165
      $region34: #{world_model_forward.1} parent=11 // pred_check_branch
        %223 = sbr.rel (%p221) target = $region36
      $region35: #{world_model_forward.1} parent=11 // pred_region
        _
      $region36: #{world_model_forward.1} parent=11 // pred_fallthru
        _
    $region12: #{world_model_forward.1} parent=5 // pred_fallthru
      _
    %p224 = scmp.lt.s32.totalorder %s13, 2
    // Predicated region
    $region37: #{world_model_forward.1} parent=5 // pred_check
      %p225 = pneg %p224
    $region38: #{world_model_forward.1} parent=5 // pred_check_branch
      %227 = sbr.rel (%p225) target = $region40
    $region39: #{world_model_forward.1} parent=5 // pred_region
      // Predicated region
      $region41: #{world_model_forward.1} parent=39 // pred_check
        %p228 = pneg %p33
      $region42: #{world_model_forward.1} parent=39 // pred_check_branch
        %230 = sbr.rel (%p228) target = $region44
      $region43: #{world_model_forward.1} parent=39 // pred_region
        %s231 = smul.u32 2, %s13
        %p232 = scmp.lt.s32.totalorder %s231, 3
        %s233 = scalar_select %p232, %s231, 3
        %s234 = smul.addr %s233, 4
        %s235 = scalar_lea.vmem %s0, %s234
        %s236 = smul.u32 2, %s13
      $region44: #{world_model_forward.1} parent=39 // pred_fallthru
        _
    $region40: #{world_model_forward.1} parent=5 // pred_fallthru
      _
    %p237 = scmp.le.s32.totalorder 1, %s13
    %p238 = scmp.lt.s32.totalorder %s13, 3
    %p239 = pnand %p237, %p238
    %p240 = pneg %p239
    // Predicated region
    $region45: #{world_model_forward.1} parent=5 // pred_check
      _
    $region46: #{world_model_forward.1} parent=5 // pred_check_branch
      %242 = sbr.rel (%p239) target = $region48
    $region47: #{world_model_forward.1} parent=5 // pred_region
      %s243 = ssub.s32 %s13, 1
      %s244 = smul.u32 2, %s18
      %p245 = scmp.lt.s32.totalorder %s244, 3
      %s246 = scalar_select %p245, %s244, 3
      %s247 = smul.addr %s246, 4
      %s248 = scalar_lea.vmem %s0, %s247
      %p249 = pneg %p39
      %p250 = pneg %p36
      %p251 = pneg %p60
      %p252 = pneg %p57
      %p253 = pneg %p81
      %p254 = pneg %p78
      %p255 = pneg %p102
      %p256 = pneg %p99
      %p257 = pneg %p123
      %p258 = pneg %p120
      %p259 = pneg %p144
      %p260 = pneg %p141
      %p261 = pneg %p165
      %p262 = pneg %p162
      %p263 = pneg %p191
      %p264 = pneg %p188
      %s265 = smul.u32 2, %s18
      %p266 = scmp.lt.s32.totalorder %s265, 3
      %s267 = scalar_select %p266, %s265, 3
      %s268 = smul.addr %s267, 4
      %s269 = scalar_lea.vmem %s7, %s268
      %s270 = smul.u32 2, %s18
      %p271 = scmp.lt.s32.totalorder %s270, 3
      %s272 = scalar_select %p271, %s270, 3
      %s273 = smul.addr %s272, 4
      %s274 = scalar_lea.vmem %s0, %s273
      %s275 = smul.u32 2, %s18
      %s276 = smul.u32 2, %s18
      %p277 = scmp.lt.s32.totalorder %s276, 3
      %s278 = scalar_select %p277, %s276, 3
      %s279 = smul.addr %s278, 4
      %s280 = scalar_lea.vmem %s7, %s279
      %s281 = smul.u32 2, %s18
      %v283 = vld [vmem:[%s274] sm:$0xf]
      %v284 = vld [vmem:[%s274 + $0x4] sm:$0xf]
      %v285 = vld [vmem:[%s1] sm:$0xf]
      %v286 = vld [vmem:[%s1 + $0x4] sm:$0xf]
      %v287 = vld [vmem:[%s1 + $0x8] sm:$0xf]
      %v288 = vld [vmem:[%s1 + $0xc] sm:$0xf]
      %v289 = vld [vmem:[%s1 + $0x10] sm:$0xf]
      %v290 = vld [vmem:[%s1 + $0x14] sm:$0xf]
      %v291 = vld [vmem:[%s1 + $0x18] sm:$0xf]
      %v292 = vld [vmem:[%s1 + $0x1c] sm:$0xf]
      %v293 = vld [vmem:[%s2] sm:$0x1]
      %v295 = vlaneseq
      %v296 = vshrl.u32 %v295, 7
      %v297 = vsub.s32 0, %v296
      %v298 = vrot.slane %v293, %v297
      %v302 = vunpack.c.l.b16 %v283
      %v303 = vunpack.c.l.b16 %v284
      %v304 = vpack.c.b16 %v303, %v302
      %v313 = vunpack.c.l.b16 %v285
      %v314 = vunpack.c.l.b16 %v286
      %v315 = vunpack.c.l.b16 %v287
      %v316 = vunpack.c.l.b16 %v288
      %v317 = vunpack.c.l.b16 %v289
      %v318 = vunpack.c.l.b16 %v290
      %v319 = vunpack.c.l.b16 %v291
      %v320 = vunpack.c.l.b16 %v292
      %v321 = vpack.c.b16 %v314, %v313
      %v322 = vpack.c.b16 %v316, %v315
      %v323 = vpack.c.b16 %v318, %v317
      %v324 = vpack.c.b16 %v320, %v319
      %vm329 = vcmask 523264
      %v331 = vsel %vm329, %v304, 0
      %333 = vmatprep.subr.bf16.mxu0 0
      %334 = vmatpush1.bf16.msra.mxu0 %v321
      %335 = vmatprep.subr.bf16.mxu0 0
      %336 = vmatpush1.bf16.msra.mxu0 %v322
      %337 = vmatprep.subr.bf16.mxu0 0
      %338 = vmatpush1.bf16.msra.mxu0 %v323
      %339 = vmatprep.subr.bf16.mxu0 0
      %340 = vmatpush1.bf16.msra.mxu0 %v324
      %341 = vmatprep.subr.bf16.mxu0 0
      %342 = vmatpush1.bf16.msra.mxu0 0
      %343 = vmatprep.subr.bf16.mxu0 0
      %344 = vmatpush1.bf16.msra.mxu0 0
      %345 = vmatprep.subr.bf16.mxu0 0
      %346 = vmatpush1.bf16.msra.mxu0 0
      %347 = vmatprep.subr.bf16.mxu0 0
      %348 = vmatpush1.bf16.msra.mxu0 0
      %349 = vmatprep.subr.bf16.mxu0 0
      %350 = vmatpush1.bf16.msra.mxu0 0
      %351 = vmatprep.subr.bf16.mxu0 0
      %352 = vmatpush1.bf16.msra.mxu0 0
      %353 = vmatprep.subr.bf16.mxu0 0
      %354 = vmatpush1.bf16.msra.mxu0 0
      %355 = vmatprep.subr.bf16.mxu0 0
      %356 = vmatpush1.bf16.msra.mxu0 0
      %357 = vmatprep.subr.bf16.mxu0 0
      %358 = vmatpush1.bf16.msra.mxu0 0
      %359 = vmatprep.subr.bf16.mxu0 0
      %360 = vmatpush1.bf16.msra.mxu0 0
      %361 = vmatprep.subr.bf16.mxu0 0
      %362 = vmatpush1.bf16.msra.mxu0 0
      %363 = vmatprep.subr.bf16.mxu0 0
      %364 = vmatpush1.bf16.msra.mxu0 0
      %365 = vmatprep.mubr.bf16.mxu0 0
      %366 = vmatmul.mubr.bf16.gmra.mrb[0].mxu0 %v331
      %v367 = vpop.f32.mrb[0].mxu0
      %v368 = vadd.f32 %v298, %v367
      %v369 = vpop.f32.mrb[0].mxu0
      %v370 = vpop.f32.mrb[0].mxu0
      %v371 = vadd.f32 %v298, %v370
      %v372 = vpop.f32.mrb[0].mxu0
      %373 = vdwg.mxu0
      %v374 = vmul.f32 %v368, %v368
      %v375 = vmul.f32 %v371, %v371
      %v376 = vmul.f32 %v368, %v374
      %v377 = vmul.f32 %v371, %v375
      %v378 = vmul.f32 %v376, 0.044715
      %v379 = vmul.f32 %v377, 0.044715
      %v380 = vadd.f32 %v368, %v378
      %v381 = vadd.f32 %v371, %v379
      %v382 = vmul.f32 %v380, 0.7978846
      %v383 = vmul.f32 %v381, 0.7978846
      %v384 = vtanh.pop %v382
      %v385 = vtanh.pop %v383
      %v386 = vadd.f32 %v384, 1.0
      %v387 = vadd.f32 %v385, 1.0
      %v388 = vmul.f32 %v386, 0.5
      %v389 = vmul.f32 %v387, 0.5
      %v390 = vmul.f32 %v368, %v388
      %v391 = vmul.f32 %v371, %v389
      %v392 = vpack.c.bf16 %v391, %v390
      %v393 = vld [vmem:[%s3] sm:$0xf]
      %v394 = vld [vmem:[%s3 + $0x4] sm:$0xf]
      %v395 = vld [vmem:[%s3 + $0x8] sm:$0xf]
      %v396 = vld [vmem:[%s3 + $0xc] sm:$0xf]
      %v397 = vld [vmem:[%s3 + $0x10] sm:$0xf]
      %v398 = vld [vmem:[%s3 + $0x14] sm:$0xf]
      %v399 = vld [vmem:[%s3 + $0x18] sm:$0xf]
      %v400 = vld [vmem:[%s3 + $0x1c] sm:$0xf]
      %v401 = vld [vmem:[%s3 + $0x20] sm:$0xf]
      %v402 = vld [vmem:[%s3 + $0x24] sm:$0xf]
      %v403 = vld [vmem:[%s3 + $0x28] sm:$0xf]
      %v404 = vld [vmem:[%s3 + $0x2c] sm:$0xf]
      %v405 = vld [vmem:[%s3 + $0x30] sm:$0xf]
      %v406 = vld [vmem:[%s3 + $0x34] sm:$0xf]
      %v407 = vld [vmem:[%s3 + $0x38] sm:$0xf]
      %v408 = vld [vmem:[%s3 + $0x3c] sm:$0xf]
      %v409 = vld [vmem:[%s4] sm:$0x1]
      %v411 = vlaneseq
      %v412 = vshrl.u32 %v411, 7
      %v413 = vsub.s32 0, %v412
      %v414 = vrot.slane %v409, %v413
      %v432 = vunpack.c.l.b16 %v393
      %v433 = vunpack.c.l.b16 %v394
      %v434 = vunpack.c.l.b16 %v395
      %v435 = vunpack.c.l.b16 %v396
      %v436 = vunpack.c.l.b16 %v397
      %v437 = vunpack.c.l.b16 %v398
      %v438 = vunpack.c.l.b16 %v399
      %v439 = vunpack.c.l.b16 %v400
      %v440 = vunpack.c.l.b16 %v401
      %v441 = vunpack.c.l.b16 %v402
      %v442 = vunpack.c.l.b16 %v403
      %v443 = vunpack.c.l.b16 %v404
      %v444 = vunpack.c.l.b16 %v405
      %v445 = vunpack.c.l.b16 %v406
      %v446 = vunpack.c.l.b16 %v407
      %v447 = vunpack.c.l.b16 %v408
      %v448 = vpack.c.b16 %v433, %v432
      %v449 = vpack.c.b16 %v435, %v434
      %v450 = vpack.c.b16 %v437, %v436
      %v451 = vpack.c.b16 %v439, %v438
      %v452 = vpack.c.b16 %v441, %v440
      %v453 = vpack.c.b16 %v443, %v442
      %v454 = vpack.c.b16 %v445, %v444
      %v455 = vpack.c.b16 %v447, %v446
      %464 = vmatprep.subr.bf16.mxu0 0
      %465 = vmatpush1.bf16.msra.mxu0 %v448
      %466 = vmatprep.subr.bf16.mxu0 0
      %467 = vmatpush1.bf16.msra.mxu0 %v449
      %468 = vmatprep.subr.bf16.mxu0 0
      %469 = vmatpush1.bf16.msra.mxu0 %v450
      %470 = vmatprep.subr.bf16.mxu0 0
      %471 = vmatpush1.bf16.msra.mxu0 %v451
      %472 = vmatprep.subr.bf16.mxu0 0
      %473 = vmatpush1.bf16.msra.mxu0 %v452
      %474 = vmatprep.subr.bf16.mxu0 0
      %475 = vmatpush1.bf16.msra.mxu0 %v453
      %476 = vmatprep.subr.bf16.mxu0 0
      %477 = vmatpush1.bf16.msra.mxu0 %v454
      %478 = vmatprep.subr.bf16.mxu0 0
      %479 = vmatpush1.bf16.msra.mxu0 %v455
      %480 = vmatprep.subr.bf16.mxu0 0
      %481 = vmatpush1.bf16.msra.mxu0 0
      %482 = vmatprep.subr.bf16.mxu0 0
      %483 = vmatpush1.bf16.msra.mxu0 0
      %484 = vmatprep.subr.bf16.mxu0 0
      %485 = vmatpush1.bf16.msra.mxu0 0
      %486 = vmatprep.subr.bf16.mxu0 0
      %487 = vmatpush1.bf16.msra.mxu0 0
      %488 = vmatprep.subr.bf16.mxu0 0
      %489 = vmatpush1.bf16.msra.mxu0 0
      %490 = vmatprep.subr.bf16.mxu0 0
      %491 = vmatpush1.bf16.msra.mxu0 0
      %492 = vmatprep.subr.bf16.mxu0 0
      %493 = vmatpush1.bf16.msra.mxu0 0
      %494 = vmatprep.subr.bf16.mxu0 0
      %495 = vmatpush1.bf16.msra.mxu0 0
      %496 = vmatprep.mubr.bf16.mxu0 0
      %497 = vmatmul.mubr.bf16.gmra.mrb[0].mxu0 %v392
      %v498 = vpop.f32.mrb[0].mxu0
      %v499 = vadd.f32 %v414, %v498
      %v500 = vpop.f32.mrb[0].mxu0
      %v501 = vpop.f32.mrb[0].mxu0
      %v502 = vadd.f32 %v414, %v501
      %v503 = vpop.f32.mrb[0].mxu0
      %504 = vdwg.mxu0
      %v505 = vmul.f32 %v499, %v499
      %v506 = vmul.f32 %v502, %v502
      %v507 = vmul.f32 %v499, %v505
      %v508 = vmul.f32 %v502, %v506
      %v509 = vmul.f32 %v507, 0.044715
      %v510 = vmul.f32 %v508, 0.044715
      %v511 = vadd.f32 %v499, %v509
      %v512 = vadd.f32 %v502, %v510
      %v513 = vmul.f32 %v511, 0.7978846
      %v514 = vmul.f32 %v512, 0.7978846
      %v515 = vtanh.pop %v513
      %v516 = vtanh.pop %v514
      %v517 = vadd.f32 %v515, 1.0
      %v518 = vadd.f32 %v516, 1.0
      %v519 = vmul.f32 %v517, 0.5
      %v520 = vmul.f32 %v518, 0.5
      %v521 = vmul.f32 %v499, %v519
      %v522 = vmul.f32 %v502, %v520
      %v523 = vpack.c.bf16 %v522, %v521
      %v524 = vld [vmem:[%s5] sm:$0xf]
      %v525 = vld [vmem:[%s5 + $0x4] sm:$0xf]
      %v526 = vld [vmem:[%s5 + $0x8] sm:$0xf]
      %v527 = vld [vmem:[%s5 + $0xc] sm:$0xf]
      %v528 = vld [vmem:[%s5 + $0x10] sm:$0xf]
      %v529 = vld [vmem:[%s5 + $0x14] sm:$0xf]
      %v530 = vld [vmem:[%s5 + $0x18] sm:$0xf]
      %v531 = vld [vmem:[%s5 + $0x1c] sm:$0xf]
      %v532 = vld [vmem:[%s5 + $0x20] sm:$0xf]
      %v533 = vld [vmem:[%s5 + $0x24] sm:$0xf]
      %v534 = vld [vmem:[%s5 + $0x28] sm:$0xf]
      %v535 = vld [vmem:[%s5 + $0x2c] sm:$0xf]
      %v536 = vld [vmem:[%s5 + $0x30] sm:$0xf]
      %v537 = vld [vmem:[%s5 + $0x34] sm:$0xf]
      %v538 = vld [vmem:[%s5 + $0x38] sm:$0xf]
      %v539 = vld [vmem:[%s5 + $0x3c] sm:$0xf]
      %v540 = vld [vmem:[%s6] sm:$0x1]
      %v542 = vlaneseq
      %v543 = vshrl.u32 %v542, 7
      %v544 = vsub.s32 0, %v543
      %v545 = vrot.slane %v540, %v544
      %v563 = vunpack.c.l.b16 %v524
      %v564 = vunpack.c.l.b16 %v525
      %v565 = vunpack.c.l.b16 %v526
      %v566 = vunpack.c.l.b16 %v527
      %v567 = vunpack.c.l.b16 %v528
      %v568 = vunpack.c.l.b16 %v529
      %v569 = vunpack.c.l.b16 %v530
      %v570 = vunpack.c.l.b16 %v531
      %v571 = vunpack.c.l.b16 %v532
      %v572 = vunpack.c.l.b16 %v533
      %v573 = vunpack.c.l.b16 %v534
      %v574 = vunpack.c.l.b16 %v535
      %v575 = vunpack.c.l.b16 %v536
      %v576 = vunpack.c.l.b16 %v537
      %v577 = vunpack.c.l.b16 %v538
      %v578 = vunpack.c.l.b16 %v539
      %v579 = vpack.c.b16 %v564, %v563
      %v580 = vpack.c.b16 %v566, %v565
      %v581 = vpack.c.b16 %v568, %v567
      %v582 = vpack.c.b16 %v570, %v569
      %v583 = vpack.c.b16 %v572, %v571
      %v584 = vpack.c.b16 %v574, %v573
      %v585 = vpack.c.b16 %v576, %v575
      %v586 = vpack.c.b16 %v578, %v577
      %595 = vmatprep.subr.bf16.mxu0 0
      %596 = vmatpush1.bf16.msra.mxu0 %v579
      %597 = vmatprep.subr.bf16.mxu0 0
      %598 = vmatpush1.bf16.msra.mxu0 %v580
      %599 = vmatprep.subr.bf16.mxu0 0
      %600 = vmatpush1.bf16.msra.mxu0 %v581
      %601 = vmatprep.subr.bf16.mxu0 0
      %602 = vmatpush1.bf16.msra.mxu0 %v582
      %603 = vmatprep.subr.bf16.mxu0 0
      %604 = vmatpush1.bf16.msra.mxu0 %v583
      %605 = vmatprep.subr.bf16.mxu0 0
      %606 = vmatpush1.bf16.msra.mxu0 %v584
      %607 = vmatprep.subr.bf16.mxu0 0
      %608 = vmatpush1.bf16.msra.mxu0 %v585
      %609 = vmatprep.subr.bf16.mxu0 0
      %610 = vmatpush1.bf16.msra.mxu0 %v586
      %611 = vmatprep.subr.bf16.mxu0 0
      %612 = vmatpush1.bf16.msra.mxu0 0
      %613 = vmatprep.subr.bf16.mxu0 0
      %614 = vmatpush1.bf16.msra.mxu0 0
      %615 = vmatprep.subr.bf16.mxu0 0
      %616 = vmatpush1.bf16.msra.mxu0 0
      %617 = vmatprep.subr.bf16.mxu0 0
      %618 = vmatpush1.bf16.msra.mxu0 0
      %619 = vmatprep.subr.bf16.mxu0 0
      %620 = vmatpush1.bf16.msra.mxu0 0
      %621 = vmatprep.subr.bf16.mxu0 0
      %622 = vmatpush1.bf16.msra.mxu0 0
      %623 = vmatprep.subr.bf16.mxu0 0
      %624 = vmatpush1.bf16.msra.mxu0 0
      %625 = vmatprep.subr.bf16.mxu0 0
      %626 = vmatpush1.bf16.msra.mxu0 0
      %627 = vmatprep.mubr.bf16.mxu0 0
      %628 = vmatmul.mubr.bf16.gmra.mrb[0].mxu0 %v523
      %v629 = vpop.f32.mrb[0].mxu0
      %v630 = vadd.f32 %v545, %v629
      %v631 = vpop.f32.mrb[0].mxu0
      %v632 = vpop.f32.mrb[0].mxu0
      %v633 = vadd.f32 %v545, %v632
      %v634 = vpop.f32.mrb[0].mxu0
      %635 = vdwg.mxu0
      %v636 = vpack.c.bf16 %v633, %v630
      %v638 = vunpack.c.l.b16 %v636
      %v639 = vunpack.c.h.b16 %v636
      %v640 = vpack.c.b16 %v638, %v638
      %v641 = vpack.c.b16 %v639, %v639
      %644 = vst [vmem:[%s280] sm:$0xf] %v640
      %645 = vst [vmem:[%s280 + $0x4] sm:$0xf] %v641
      %s646 = smul.u32 2, %s18
      %p647 = scmp.lt.s32.totalorder %s646, 3
      %s648 = scalar_select %p647, %s646, 3
      %s649 = smul.addr %s648, 4
      %s650 = scalar_lea.vmem %s7, %s649
      // Predicated region
      $region49: #{world_model_forward.1} parent=47 // pred_check
        %p651 = pneg %p188
      $region50: #{world_model_forward.1} parent=47 // pred_check_branch
        %653 = sbr.rel (%p651) target = $region52
      $region51: #{world_model_forward.1} parent=47 // pred_region
        %s654 = smul.u32 2, %s18
      $region52: #{world_model_forward.1} parent=47 // pred_fallthru
        _
    $region48: #{world_model_forward.1} parent=5 // pred_fallthru
      _
    %p655 = scmp.le.s32.totalorder 2, %s13
    // Predicated region
    $region53: #{world_model_forward.1} parent=5 // pred_check
      %p656 = pneg %p655
    $region54: #{world_model_forward.1} parent=5 // pred_check_branch
      %658 = sbr.rel (%p656) target = $region56
    $region55: #{world_model_forward.1} parent=5 // pred_region
      %s659 = ssub.s32 %s13, 2
      // Predicated region
      $region57: #{world_model_forward.1} parent=55 // pred_check
        %p660 = pneg %p194
      $region58: #{world_model_forward.1} parent=55 // pred_check_branch
        %662 = sbr.rel (%p660) target = $region60
      $region59: #{world_model_forward.1} parent=55 // pred_region
        %s663 = smul.u32 2, %s19
        %p664 = scmp.lt.s32.totalorder %s663, 3
        %s665 = scalar_select %p664, %s663, 3
        %s666 = smul.addr %s665, 4
        %s667 = scalar_lea.vmem %s7, %s666
      $region60: #{world_model_forward.1} parent=55 // pred_fallthru
        _
    $region56: #{world_model_forward.1} parent=5 // pred_fallthru
      _
  $region6: #{world_model_forward.1} parent=0 // loop_footer
    %s17 = sadd.s32 1, %s13
  $region7: #{world_model_forward.1} parent=0 // loop_footer_branch
    %12 = sbr.rel target = $region3
  $region8: #{world_model_forward.1} parent=0 // loop_exit
    _

</llo_original>
